<compile_context>
chip_gen: v6e
topology: v6e:2x2x1
jax: 0.10.0
libtpu: 0.0.40
codegen_flags: <defaults>
</compile_context>

<pallas_src>
import math
import functools

import jax
import jax.numpy as jnp
from jax.experimental import pallas as pl
from jax.experimental.pallas import tpu as pltpu


# --------------------------- Linear: y = x @ w + b --------------------------
# w is stored as (d_in, d_out) == torch weight.T, so the kernel is a plain dot.

def _linear_kernel(x_ref, w_ref, b_ref, o_ref):
    acc = jnp.dot(
        x_ref[...].astype(jnp.float32),
        w_ref[...].astype(jnp.float32),
        preferred_element_type=jnp.float32,
    )
    o_ref[...] = (acc + b_ref[...].astype(jnp.float32)).astype(o_ref.dtype)


def linear(x, w, b, *, rows_tile=256):
    """x: (R, d_in); w: (d_in, d_out); b: (d_out,) -> (R, d_out)."""
    R, d_in = x.shape
    d_out = w.shape[1]

    # Large row tiles amortize the ~0.35 us per-grid-step overhead for this
    # memory-bound op.  Small inputs (like the demo) use a single full block.
    if R <= rows_tile:
        rt, r_pad = R, R
        xp = x
    else:
        rt = rows_tile                          # multiple of 8 (sublane)
        r_pad = pl.cdiv(R, rt) * rt
        xp = jnp.pad(x, ((0, r_pad - R), (0, 0))) if r_pad != R else x

    b2 = b.reshape(1, d_out)

    out = pl.pallas_call(
        _linear_kernel,
        out_shape=jax.ShapeDtypeStruct((r_pad, d_out), x.dtype),
        grid=(r_pad // rt,),
        in_specs=[
            pl.BlockSpec((rt, d_in), lambda i: (i, 0)),
            pl.BlockSpec((d_in, d_out), lambda i: (0, 0)),
            pl.BlockSpec((1, d_out), lambda i: (0, 0)),
        ],
        out_specs=pl.BlockSpec((rt, d_out), lambda i: (i, 0)),
        compiler_params=pltpu.CompilerParams(
            dimension_semantics=("parallel",),
        ),
    )(xp, w, b2)
    return out[:R]


# --------------------- Scaled-dot-product attention kernel ------------------
# One grid step = one batch element, all heads at once: blocks (H, N, d_k).

def _attn_kernel(q_ref, k_ref, v_ref, m_ref, o_ref, *, scale):
    q = q_ref[...].astype(jnp.float32)           # (H, N, Dk)
    k = k_ref[...].astype(jnp.float32)           # (H, N, Dk)
    v = v_ref[...].astype(jnp.float32)           # (H, N, Dk)

    scores = jnp.einsum("hqd,hkd->hqk", q, k,
                        preferred_element_type=jnp.float32) * scale
    mask = m_ref[...]                            # (N, N) int32, 1=keep 0=mask
    scores = jnp.where(mask[None, :, :] == 0, jnp.float32(-1e9), scores)

    s_max = jnp.max(scores, axis=-1, keepdims=True)
    e = jnp.exp(scores - s_max)                  # EUP
    denom = jnp.sum(e, axis=-1, keepdims=True)   # XLU lane reduce
    p = e * pl.reciprocal(denom, approx=False)   # divide -> EUP recip + VPU mul
    # TODO(synk): dropout on p (nn.Dropout(0.1)) omitted — eval-mode forward.

    ctx = jnp.einsum("hqk,hkd->hqd", p, v, preferred_element_type=jnp.float32)
    o_ref[...] = ctx.astype(o_ref.dtype)


def _attention(q, k, v, mask):
    """q,k,v: (B, H, N, Dk); mask: (B, N, N) int32 -> (B, H, N, Dk)."""
    B, H, N, Dk = q.shape
    kernel = functools.partial(_attn_kernel, scale=1.0 / math.sqrt(Dk))
    return pl.pallas_call(
        kernel,
        out_shape=jax.ShapeDtypeStruct((B, H, N, Dk), q.dtype),
        grid=(B,),
        in_specs=[
            pl.BlockSpec((None, H, N, Dk), lambda b: (b, 0, 0, 0)),
            pl.BlockSpec((None, H, N, Dk), lambda b: (b, 0, 0, 0)),
            pl.BlockSpec((None, H, N, Dk), lambda b: (b, 0, 0, 0)),
            pl.BlockSpec((None, N, N), lambda b: (b, 0, 0)),
        ],
        out_specs=pl.BlockSpec((None, H, N, Dk), lambda b: (b, 0, 0, 0)),
        compiler_params=pltpu.CompilerParams(
            dimension_semantics=("parallel",),   # sharded across TCs on v7x
        ),
    )(q, k, v, mask)


# ----------------------------- Full MHA forward -----------------------------

def multi_head_attention(query, key, value, params, *, n_heads, mask=None):
    """query/key/value: (B, N, d_model); params = (wq,bq,wk,bk,wv,bv,wo,bo)."""
    wq, bq, wk, bk, wv, bv, wo, bo = params
    B, N, D = query.shape
    dk = D // n_heads

    def proj(x, w, b):                           # 'b n (h d) -> b h n d'
        y = linear(x.reshape(B * N, D), w, b)
        y = y.reshape(B, N, n_heads, dk)
        return jnp.transpose(y, (0, 2, 1, 3))

    qh = proj(query, wq, bq)
    kh = proj(key, wk, bk)
    vh = proj(value, wv, bv)

    if mask is None:
        mask_arr = jnp.ones((B, N, N), dtype=jnp.int32)
    else:
        mask_arr = jnp.broadcast_to(
            mask.astype(jnp.int32).reshape(-1, N, N), (B, N, N))

    ctx = _attention(qh, kh, vh, mask_arr)       # (B, H, N, dk)
    ctx = jnp.transpose(ctx, (0, 2, 1, 3)).reshape(B * N, D)  # 'b h n d -> b n (h d)'
    out = linear(ctx, wo, bo)
    return out.reshape(B, N, D)


# ------------------------------------ demo -----------------------------------

if __name__ == "__main__":
    B, N, D, H = 2, 8, 32, 4
    ks = jax.random.split(jax.random.PRNGKey(0), 12)

    q = jax.random.normal(ks[0], (B, N, D), dtype=jnp.float32)
    k = jax.random.normal(ks[1], (B, N, D), dtype=jnp.float32)
    v = jax.random.normal(ks[2], (B, N, D), dtype=jnp.float32)

    def init_linear(kw, kb):
        w = jax.random.normal(kw, (D, D), dtype=jnp.float32) / math.sqrt(D)
        b = jax.random.normal(kb, (D,), dtype=jnp.float32) * 0.01
        return w, b

    wq, bq = init_linear(ks[3], ks[4])
    wk, bk = init_linear(ks[5], ks[6])
    wv, bv = init_linear(ks[7], ks[8])
    wo, bo = init_linear(ks[9], ks[10])
    params = (wq, bq, wk, bk, wv, bv, wo, bo)

    # causal mask: 1 = keep, 0 = masked (-> -1e9 like torch masked_fill)
    mask = jnp.broadcast_to(jnp.tril(jnp.ones((N, N), dtype=jnp.int32)), (B, N, N))

    out = multi_head_attention(q, k, v, params, n_heads=H, mask=mask)
    out = jax.block_until_ready(out)

    # pure-JAX reference implementing the torch forward (eval-mode dropout).
    def ref_forward(q, k, v, params, n_heads, mask):
        wq, bq, wk, bk, wv, bv, wo, bo = params
        B_, N_, D_ = q.shape
        dkk = D_ // n_heads

        def proj(x, w, b):
            y = x.reshape(B_ * N_, D_) @ w + b
            return jnp.transpose(y.reshape(B_, N_, n_heads, dkk), (0, 2, 1, 3))

        qh, kh, vh = proj(q, wq, bq), proj(k, wk, bk), proj(v, wv, bv)
        scores = jnp.einsum("bhqd,bhkd->bhqk", qh, kh) / math.sqrt(dkk)
        scores = jnp.where(mask[:, None, :, :] == 0, -1e9, scores)
        p = jax.nn.softmax(scores, axis=-1)
        ctx = jnp.einsum("bhqk,bhkd->bhqd", p, vh)
        ctx = jnp.transpose(ctx, (0, 2, 1, 3)).reshape(B_ * N_, D_)
        return (ctx @ wo + bo).reshape(B_, N_, D_)

    ref = ref_forward(q, k, v, params, H, mask)
    err = float(jnp.max(jnp.abs(out - ref)))
    assert jnp.allclose(out, ref, atol=2e-5, rtol=2e-5), err

    print("KERNEL_OK")
</pallas_src>

<mosaic_0001>
module attributes {stable_mosaic.version = 11 : i64} {
  func.func @_linear_kernel(%arg0: i32, %arg1: memref<16x32xf32, #tpu.memory_space<vmem>>, %arg2: memref<32x32xf32, #tpu.memory_space<vmem>>, %arg3: memref<1x32xf32, #tpu.memory_space<vmem>>, %arg4: memref<16x32xf32, #tpu.memory_space<vmem>>) attributes {dimension_semantics = [#tpu.dimension_semantics<parallel>], iteration_bounds = array<i64: 1>, scalar_prefetch = 0 : i64, scratch_operands = 0 : i64, tpu.core_type = #tpu.core_type<tc>, window_params = [{transform_indices = @transform_0, window_bounds = array<i64: 16, 32>}, {pipeline_mode = #tpu.pipeline_mode<synchronous>, transform_indices = @transform_1, window_bounds = array<i64: 32, 32>}, {pipeline_mode = #tpu.pipeline_mode<synchronous>, transform_indices = @transform_2, window_bounds = array<i64: 1, 32>}, {transform_indices = @transform_3, window_bounds = array<i64: 16, 32>}]} {
    %c0 = arith.constant 0 : index
    %c0_0 = arith.constant 0 : index
    %0 = vector.load %arg1[%c0, %c0_0] : memref<16x32xf32, #tpu.memory_space<vmem>>, vector<16x32xf32>
    %c0_1 = arith.constant 0 : index
    %c0_2 = arith.constant 0 : index
    %1 = vector.load %arg2[%c0_1, %c0_2] : memref<32x32xf32, #tpu.memory_space<vmem>>, vector<32x32xf32>
    %cst = arith.constant dense<0.000000e+00> : vector<16x32xf32>
    %2 = tpu.matmul %0, %1, %cst {dimension_numbers = #tpu.dot_dimension_numbers<[1], [0], [0], [1], [0, 0, 1, 1], [], []>} : vector<16x32xf32>, vector<32x32xf32>, vector<16x32xf32> -> vector<16x32xf32>
    %c0_3 = arith.constant 0 : index
    %c0_4 = arith.constant 0 : index
    %3 = vector.load %arg3[%c0_3, %c0_4] : memref<1x32xf32, #tpu.memory_space<vmem>>, vector<1x32xf32>
    %4 = vector.broadcast %3 : vector<1x32xf32> to vector<16x32xf32>
    %5 = arith.addf %2, %4 : vector<16x32xf32>
    %c0_5 = arith.constant 0 : index
    %c0_6 = arith.constant 0 : index
    %6 = vector.load %arg4[%c0_5, %c0_6] : memref<16x32xf32, #tpu.memory_space<vmem>>, vector<16x32xf32>
    tpu.vector_store %arg4[%c0_5, %c0_6], %5 {strides = array<i32>} : memref<16x32xf32, #tpu.memory_space<vmem>>, vector<16x32xf32>,
    return
  }
  func.func @transform_0(%arg0: i32) -> (i32, i32) {
    %c0_i32 = arith.constant 0 : i32
    %c0_i32_0 = arith.constant 0 : i32
    return %arg0, %c0_i32 : i32, i32
  }
  func.func @transform_1(%arg0: i32) -> (i32, i32) {
    %c0_i32 = arith.constant 0 : i32
    %c0_i32_0 = arith.constant 0 : i32
    %c0_i32_1 = arith.constant 0 : i32
    return %c0_i32, %c0_i32_0 : i32, i32
  }
  func.func @transform_2(%arg0: i32) -> (i32, i32) {
    %c0_i32 = arith.constant 0 : i32
    %c0_i32_0 = arith.constant 0 : i32
    %c0_i32_1 = arith.constant 0 : i32
    return %c0_i32, %c0_i32_0 : i32, i32
  }
  func.func @transform_3(%arg0: i32) -> (i32, i32) {
    %c0_i32 = arith.constant 0 : i32
    %c0_i32_0 = arith.constant 0 : i32
    return %arg0, %c0_i32 : i32, i32
  }
}

</mosaic_0001>

<llo_original>
// kernel: tpu_custom_call.1
$region0: #{tpu_custom_call.1}
  #allocation0 [shape = 'u32[]', space=smem, size = 0x4, offset = 0x4, fixed_abs, tag = 'smem constant byte address 0x4 - core index']
  #allocation1 [shape = 'u32[144,128]{1,0:T(1,128)}', space=vmem, size = 0x12000, scoped, tag = 'internal scratch']
  %s0 = inlined_call_operand.hbm [shape: f32[16,32], index: 0, kind: input, shape index: {}]
  %s1 = inlined_call_operand.hbm [shape: f32[32,32], index: 1, kind: input, shape index: {}]
  %s2 = inlined_call_operand.vmem [shape: f32[1,32], index: 2, kind: input, shape index: {}]
  %s3 = inlined_call_operand.hbm [shape: f32[16,32], index: 3, kind: output, shape index: {}]
  %s4 = sld [smem:[#allocation0]]
  $region30: #{tpu_custom_call.1} parent=0
    _
  %s6 = ssub.s32 1, %s4
  %s7 = scalar_select 0, %s6, %s4
  $region1: #{tpu_custom_call.1} parent=0
    #allocation2 [shape = 'u8[8192]{0}', space=vmem, size = 0x2000, scoped, tag = 'input window, operand 0, single buffered']
    #allocation3 [shape = 's32[1]{0}', space=sflag, size = 0x4, scoped, tag = 'scoped memory for tpu_custom_call.1']
    #allocation4 [shape = 's32[1]{0}', space=sflag, size = 0x4, scoped, tag = 'scoped memory for tpu_custom_call.1']
    #allocation5 [shape = 'u8[16384]{0}', space=vmem, size = 0x4000, scoped, tag = 'input window, operand 1, single buffered']
    #allocation6 [shape = 's32[1]{0}', space=sflag, size = 0x4, scoped, tag = 'scoped memory for tpu_custom_call.1']
    #allocation7 [shape = 'u8[8192]{0}', space=vmem, size = 0x2000, scoped, tag = 'output window, operand 0, single buffered']
    %8 = vsyncpa [#allocation3], 0
    %9 = vsyncpa [#allocation6], 0
    %10 = vsyncpa [#allocation4], 0
    // Predicated region
    $region2: #{tpu_custom_call.1} parent=1 // pred_check
      _
    $region3: #{tpu_custom_call.1} parent=1 // pred_check_branch
      %12 = sbr.rel (0) target = $region5
    $region4: #{tpu_custom_call.1} parent=1 // pred_region
      %s14 = ssub.s32 256, 256
      %15 = vsyncadd [#allocation3], %s14
      %s16 = sshll.u32 [#allocation2], 4
      %s17 = int_to_ptr.vmem [resolvable:$true] %s16
      %22 = dma.hbm_to_vmem [thread:$0]  %s0, 256, %s17, [#allocation3], 128, 128, 8
    $region5: #{tpu_custom_call.1} parent=1 // pred_fallthru
      _
    // Predicated region
    $region6: #{tpu_custom_call.1} parent=1 // pred_check
      _
    $region7: #{tpu_custom_call.1} parent=1 // pred_check_branch
      %24 = sbr.rel (0) target = $region9
    $region8: #{tpu_custom_call.1} parent=1 // pred_region
      %s26 = ssub.s32 512, 512
      %27 = vsyncadd [#allocation6], %s26
      %s28 = sshll.u32 [#allocation5], 4
      %s29 = int_to_ptr.vmem [resolvable:$true] %s28
      %34 = dma.hbm_to_vmem [thread:$0]  %s1, 512, %s29, [#allocation6], 128, 128, 8
    $region9: #{tpu_custom_call.1} parent=1 // pred_fallthru
      _
    // Predicated region
    $region10: #{tpu_custom_call.1} parent=1 // pred_check
      _
    $region11: #{tpu_custom_call.1} parent=1 // pred_check_branch
      %36 = sbr.rel (0) target = $region13
    $region12: #{tpu_custom_call.1} parent=1 // pred_region
      _
    $region13: #{tpu_custom_call.1} parent=1 // pred_fallthru
      _
    // Predicated region
    $region14: #{tpu_custom_call.1} parent=1 // pred_check
      _
    $region15: #{tpu_custom_call.1} parent=1 // pred_check_branch
      %38 = sbr.rel (0) target = $region17
    $region16: #{tpu_custom_call.1} parent=1 // pred_region
      %39 = dma.done [#allocation3], 256
    $region17: #{tpu_custom_call.1} parent=1 // pred_fallthru
      _
    // Predicated region
    $region18: #{tpu_custom_call.1} parent=1 // pred_check
      _
    $region19: #{tpu_custom_call.1} parent=1 // pred_check_branch
      %41 = sbr.rel (0) target = $region21
    $region20: #{tpu_custom_call.1} parent=1 // pred_region
      %42 = dma.done [#allocation6], 512
    $region21: #{tpu_custom_call.1} parent=1 // pred_fallthru
      _
    %v43 = vld [vmem:[#allocation2] sm:$0xff]
    %v44 = vld [vmem:[#allocation2 + $0x8] sm:$0xff]
    %v45 = vld [vmem:[#allocation5] sm:$0xff]
    %v46 = vld [vmem:[#allocation5 + $0x8] sm:$0xff]
    %v47 = vld [vmem:[#allocation5 + $0x10] sm:$0xff]
    %v48 = vld [vmem:[#allocation5 + $0x18] sm:$0xff]
    %v49 = vld [vmem:[%s2] sm:$0x1]
    %v51 = vlaneseq
    %v52 = vshrl.u32 %v51, 7
    %v53 = vsub.s32 0, %v52
    %v54 = vrot.slane %v49, %v53
    %vm56 = vcmask 261120
    %v58 = vsel %vm56, %v43, 0
    %v61 = vsel %vm56, %v44, 0
    %63 = vmatprep.subr.mxu0 0.0
    %64 = vmatpush1.msra.mxu0 0.0
    %65 = vmatprep.subr.mxu0 0.0
    %66 = vmatpush1.msra.mxu0 0.0
    %67 = vmatprep.subr.mxu0 0.0
    %68 = vmatpush1.msra.mxu0 0.0
    %69 = vmatprep.subr.mxu0 0.0
    %70 = vmatpush1.msra.mxu0 0.0
    %71 = vmatprep.subr.mxu0 0.0
    %72 = vmatpush1.msra.mxu0 0.0
    %73 = vmatprep.subr.mxu0 0.0
    %74 = vmatpush1.msra.mxu0 0.0
    %75 = vmatprep.subr.mxu0 0.0
    %76 = vmatpush1.msra.mxu0 0.0
    %77 = vmatprep.subr.mxu0 0.0
    %78 = vmatpush1.msra.mxu0 0.0
    %79 = vmatprep.subr.mxu0 0.0
    %80 = vmatpush1.msra.mxu0 0.0
    %81 = vmatprep.subr.mxu0 0.0
    %82 = vmatpush1.msra.mxu0 0.0
    %83 = vmatprep.subr.mxu0 0.0
    %84 = vmatpush1.msra.mxu0 0.0
    %85 = vmatprep.subr.mxu0 0.0
    %86 = vmatpush1.msra.mxu0 0.0
    %87 = vmatprep.subr.mxu0 0.0
    %88 = vmatpush1.msra.mxu0 %v48
    %89 = vmatprep.subr.mxu0 0.0
    %90 = vmatpush1.msra.mxu0 %v47
    %91 = vmatprep.subr.mxu0 0.0
    %92 = vmatpush1.msra.mxu0 %v46
    %93 = vmatprep.subr.mxu0 0.0
    %94 = vmatpush1.msra.mxu0 %v45
    %95 = vmatprep.subr.mxu0 0.0
    %96 = vmatpush2.msra.mxu0 0.0
    %97 = vmatprep.subr.mxu0 0.0
    %98 = vmatpush2.msra.mxu0 0.0
    %99 = vmatprep.subr.mxu0 0.0
    %100 = vmatpush2.msra.mxu0 0.0
    %101 = vmatprep.subr.mxu0 0.0
    %102 = vmatpush2.msra.mxu0 0.0
    %103 = vmatprep.subr.mxu0 0.0
    %104 = vmatpush2.msra.mxu0 0.0
    %105 = vmatprep.subr.mxu0 0.0
    %106 = vmatpush2.msra.mxu0 0.0
    %107 = vmatprep.subr.mxu0 0.0
    %108 = vmatpush2.msra.mxu0 0.0
    %109 = vmatprep.subr.mxu0 0.0
    %110 = vmatpush2.msra.mxu0 0.0
    %111 = vmatprep.subr.mxu0 0.0
    %112 = vmatpush2.msra.mxu0 0.0
    %113 = vmatprep.subr.mxu0 0.0
    %114 = vmatpush2.msra.mxu0 0.0
    %115 = vmatprep.subr.mxu0 0.0
    %116 = vmatpush2.msra.mxu0 0.0
    %117 = vmatprep.subr.mxu0 0.0
    %118 = vmatpush2.msra.mxu0 0.0
    %119 = vmatprep.subr.mxu0 0.0
    %120 = vmatpush2.msra.mxu0 0.0
    %121 = vmatprep.subr.mxu0 0.0
    %122 = vmatpush2.msra.mxu0 0.0
    %123 = vmatprep.subr.mxu0 0.0
    %124 = vmatpush2.msra.mxu0 0.0
    %125 = vmatprep.subr.mxu0 0.0
    %126 = vmatpush2.msra.mxu0 0.0
    %127 = vmatprep.mubr.f32.mxu0 0.0
    %128 = vmatmul.mubr.f32.gmra.mxu0 %v58
    %v129 = vpop.f32.mrf.mxu0
    %v130 = vadd.f32 %v54, %v129
    %v131 = vpop.f32.mrf.mxu0
    %132 = vmatprep.mubr.f32.mxu0 0.0
    %133 = vmatmul.mubr.f32.gmra.mxu0 %v61
    %v134 = vpop.f32.mrf.mxu0
    %v135 = vadd.f32 %v54, %v134
    %v136 = vpop.f32.mrf.mxu0
    %137 = vdwg.mxu0
    %138 = vst.msk [vmem:[#allocation7] sm:$0xff] %vm56, %v130
    %139 = vst.msk [vmem:[#allocation7 + $0x8] sm:$0xff] %vm56, %v135
    // Predicated region
    $region22: #{tpu_custom_call.1} parent=1 // pred_check
      _
    $region23: #{tpu_custom_call.1} parent=1 // pred_check_branch
      %141 = sbr.rel (0) target = $region25
    $region24: #{tpu_custom_call.1} parent=1 // pred_region
      %s143 = ssub.s32 256, 256
      %144 = vsyncadd [#allocation4], %s143
      %s145 = sshll.u32 [#allocation7], 4
      %s146 = int_to_ptr.vmem [resolvable:$true] %s145
      %151 = dma.vmem_to_hbm [thread:$0]  %s146, 256, %s3, [#allocation4], 128, 128, 8
    $region25: #{tpu_custom_call.1} parent=1 // pred_fallthru
      _
    // Predicated region
    $region26: #{tpu_custom_call.1} parent=1 // pred_check
      _
    $region27: #{tpu_custom_call.1} parent=1 // pred_check_branch
      %153 = sbr.rel (0) target = $region29
    $region28: #{tpu_custom_call.1} parent=1 // pred_region
      %154 = dma.done [#allocation4], 256
    $region29: #{tpu_custom_call.1} parent=1 // pred_fallthru
      _
    %155 = vsyncpa [#allocation3], 1
    %156 = vsyncpa [#allocation6], 1
    %157 = vsyncpa [#allocation4], 1

</llo_original>
